<compile_context>
chip_gen: v7x
topology: tpu7x:2x2x1
jax: 0.10.0
libtpu: 0.0.40
codegen_flags: <defaults>
</compile_context>

<pallas_src>
import math

import numpy as np
import jax
import jax.numpy as jnp
from jax.experimental import pallas as pl
from jax.experimental.pallas import tpu as pltpu


# ----------------------------------------------------------------------------
# Deterministic parameter init (mirrors baselines_orthogonal_ with gain=sqrt(2))
# ----------------------------------------------------------------------------
def baselines_orthogonal(shape_out_in, gain, rng):
    """NumPy replica of baselines_orthogonal_ for a (out, in) weight tensor."""
    rows, cols = shape_out_in[0], int(np.prod(shape_out_in[1:]))
    flattened = rng.normal(0.0, 1.0, (cols, rows))
    u, _, v = np.linalg.svd(flattened, full_matrices=False)
    q = u if u.shape == (cols, rows) else v
    q = q.transpose().reshape(shape_out_in)
    return (q * gain).astype(np.float32)


def make_mlp_params(indim, num_layers=2, num_hidden=64, seed=0):
    """Returns list of (W, b) with W shaped (in, out) for x @ W + b."""
    rng = np.random.RandomState(seed)
    gain = float(math.sqrt(2))
    params = []
    for i in range(num_layers):
        in_f = indim if i == 0 else num_hidden
        w_oi = baselines_orthogonal((num_hidden, in_f), gain, rng)   # (out, in)
        bound = 1.0 / math.sqrt(in_f)
        b = rng.uniform(-bound, bound, (num_hidden,)).astype(np.float32)
        params.append((jnp.asarray(w_oi.T), jnp.asarray(b)))          # (in, out)
    return params


# ----------------------------------------------------------------------------
# Pallas kernel: fused 2-layer MLP with optional K-split accumulation
# ----------------------------------------------------------------------------
def mlp2_kernel(x_ref, w1_ref, b1_ref, w2_ref, b2_ref, o_ref, acc_ref):
    """grid = (batch_tiles, k_tiles).  Layer-1 partial products accumulate over
    the K axis into acc_ref; on the last K step: bias+tanh, layer-2 dot,
    bias+tanh, 128-lane store."""
    k = pl.program_id(1)

    # bf16 x bf16 -> f32 accumulation on the MXU.
    partial = jnp.dot(x_ref[...], w1_ref[...],
                      preferred_element_type=jnp.float32)

    @pl.when(k == 0)
    def _():
        acc_ref[...] = partial

    @pl.when(k > 0)
    def _():
        acc_ref[...] += partial

    @pl.when(k == pl.num_programs(1) - 1)
    def _():
        h = jnp.tanh(acc_ref[...] + b1_ref[...])                 # f32 (TB, 128)
        y = jnp.dot(h.astype(w2_ref.dtype), w2_ref[...],
                    preferred_element_type=jnp.float32)
        o_ref[...] = jnp.tanh(y + b2_ref[...]).astype(o_ref.dtype)


# ----------------------------------------------------------------------------
# Wrapper
# ----------------------------------------------------------------------------
def _round_up(n, m):
    return ((n + m - 1) // m) * m


def _cdiv(a, b):
    return -(-a // b)


def _choose_batch_tile(B, k_cols, x_itemsize, *, target_bytes, max_tb,
                       min_split_batch):
    """Largest batch tile (multiple of 8) whose x slab is ~target_bytes, with an
    even tile count >= 2 for v7x megacore balance when the batch is big enough."""
    row_bytes = max(1, k_cols * x_itemsize)
    cap = max(8, min(max_tb, (target_bytes // row_bytes) // 8 * 8))
    if B <= min(max(8, min_split_batch), 2 * cap):
        return B                                   # one full-batch tile (exempt dim)
    nt = max(2, _cdiv(B, cap))
    nt += nt % 2                                   # even tile count
    return max(8, _round_up(_cdiv(B, nt), 8))


def mlp_forward(x, params, *, max_batch_tile=2048, x_tile_bytes=8 << 20,
                min_split_batch=512, k_nosplit_max=32768, k_tile=16384):
    """Forward pass of Mlp (num_layers=2, acti=Tanh, layernorm=False).

    x: (B, ...) array; returns (B, num_hidden) float32.
    """
    # TODO(synk): layernorm=True / acti != Tanh variants of the module are not
    # implemented (module defaults are layernorm=False, acti=nn.Tanh).
    B = x.shape[0]
    x2d = x.reshape(B, -1)                          # == x.view(B, -1)
    (w1, b1), (w2, b2) = params
    indim = x2d.shape[1]
    hidden = w1.shape[1]
    assert w1.shape == (indim, hidden) and w2.shape == (hidden, hidden)
    hid_p = _round_up(hidden, 128)                  # lane-dense hidden (>=128)

    # bf16 operands for both dots; weights/biases padded hidden->128 with zeros
    # (padded lanes stay exactly 0 through both layers; wrapper slices them off).
    xb = x2d.astype(jnp.bfloat16)
    w1b = w1.astype(jnp.bfloat16)
    w2b = jnp.pad(w2, ((0, hid_p - hidden), (0, hid_p - hidden))).astype(jnp.bfloat16)
    b1p = jnp.pad(b1, (0, hid_p - hidden)).astype(jnp.float32).reshape(1, hid_p)
    b2p = jnp.pad(b2, (0, hid_p - hidden)).astype(jnp.float32).reshape(1, hid_p)

    # Feature (K) axis: keep it as ONE full-array block (exempt from the 128
    # divisibility rule) whenever the resident W1 slab is small enough, so x is
    # never copied/padded in HBM.  Only very large indim gets a K-split.
    if indim <= k_nosplit_max:
        nk, TK = 1, indim
        w1b = jnp.pad(w1b, ((0, 0), (0, hid_p - hidden)))
    else:
        nk = _cdiv(indim, k_tile)
        TK = _round_up(_cdiv(indim, nk), 128)
        k_total = nk * TK
        # TODO(synk): this path pads x by <= nk*128 zero columns (<1% of K);
        # unavoidable without ragged K blocks.
        xb = jnp.pad(xb, ((0, 0), (0, k_total - indim)))
        w1b = jnp.pad(w1b, ((0, k_total - indim), (0, hid_p - hidden)))

    TB = _choose_batch_tile(B, TK, 2, target_bytes=x_tile_bytes,
                            max_tb=max_batch_tile,
                            min_split_batch=min_split_batch)
    nb = _cdiv(B, TB)       # batch is NOT padded; last tile may be ragged (masked)

    # VMEM budget: double-buffered x/out tiles, single-buffered resident weights
    # (double for W1 only when K-split), f32 accumulator + h/y intermediates,
    # plus headroom; capped at 56 MiB (< v7x's 64 MiB physical per-TC VMEM).
    vmem_need = (2 * TB * TK * 2                              # x tile (bf16, 2 bufs)
                 + (1 if nk == 1 else 2) * TK * hid_p * 2     # W1 block(s) bf16
                 + hid_p * hid_p * 2 + 2 * hid_p * 4          # W2 + biases
                 + 2 * TB * hid_p * 4                         # out tile (f32, 2 bufs)
                 + TB * hid_p * 4                             # acc scratch
                 + 2 * TB * hid_p * 4)                        # h / y intermediates
    vmem_limit = int(min(max(vmem_need + (8 << 20), 32 << 20), 56 << 20))

    const_map = lambda i, k: (0, 0)
    resident = dict(pipeline_mode=pl.Buffered(1))   # DMA once, single buffer
    w1_kwargs = resident if nk == 1 else {}

    out = pl.pallas_call(
        mlp2_kernel,
        out_shape=jax.ShapeDtypeStruct((B, hid_p), jnp.float32),
        grid_spec=pltpu.PrefetchScalarGridSpec(
            num_scalar_prefetch=0,
            grid=(nb, nk),                          # K (reduction) axis last
            in_specs=[
                pl.BlockSpec((TB, TK), lambda i, k: (i, k)),              # x tile
                pl.BlockSpec((TK, hid_p), lambda i, k: (k, 0), **w1_kwargs),
                pl.BlockSpec((1, hid_p), const_map, **resident),          # b1
                pl.BlockSpec((hid_p, hid_p), const_map, **resident),      # W2
                pl.BlockSpec((1, hid_p), const_map, **resident),          # b2
            ],
            out_specs=pl.BlockSpec((TB, hid_p), lambda i, k: (i, 0)),
            scratch_shapes=[pltpu.VMEM((TB, hid_p), jnp.float32)],
        ),
        compiler_params=pltpu.CompilerParams(
            dimension_semantics=("parallel", "arbitrary"),   # megacore on batch
            vmem_limit_bytes=vmem_limit,
        ),
    )(xb, w1b, b1p, w2b, b2p)

    # Keep the kernel's store 128-lane dense; only this cheap column slice
    # (~6% of x bytes) remains outside the kernel.
    return out[:, :hidden]


# ----------------------------------------------------------------------------
# Pure-JAX references
# ----------------------------------------------------------------------------
def mlp_forward_ref(x, params, dtype=jnp.float32):
    """Reference; dtype=bfloat16 matches the kernel's operand precision."""
    h = x.reshape(x.shape[0], -1)
    for w, b in params:
        h = jnp.tanh(jnp.dot(h.astype(dtype), w.astype(dtype),
                             preferred_element_type=jnp.float32) + b)
    return h


if __name__ == "__main__":
    # Example input consistent with the module: NCHW image flattened by forward.
    B, C, H, W = 2, 4, 16, 16
    indim = C * H * W                       # 1024
    num_hidden = 64

    key = jax.random.PRNGKey(0)
    x = jax.random.normal(key, (B, C, H, W), dtype=jnp.float32)
    params = make_mlp_params(indim, num_hidden=num_hidden, seed=0)

    # --- main path: single full-K block, resident weights, bf16 dots ---
    fwd = jax.jit(mlp_forward)
    y = jax.block_until_ready(fwd(x, params))
    assert y.shape == (B, num_hidden)

    y_bf = mlp_forward_ref(x, params, dtype=jnp.bfloat16)   # precision-matched ref
    y_f32 = mlp_forward_ref(x, params, dtype=jnp.float32)   # full-precision ref
    np.testing.assert_allclose(np.asarray(y), np.asarray(y_bf), rtol=2e-3, atol=2e-3)
    np.testing.assert_allclose(np.asarray(y), np.asarray(y_f32), rtol=5e-2, atol=5e-2)

    # --- exercise the K-split (accumulator) path at small shapes ---
    B2 = 20
    x2 = jax.random.normal(jax.random.PRNGKey(0), (B2, C, H, W), dtype=jnp.float32)
    y2 = jax.block_until_ready(
        mlp_forward(x2, params, k_nosplit_max=512, k_tile=256))
    np.testing.assert_allclose(
        np.asarray(y2),
        np.asarray(mlp_forward_ref(x2, params, dtype=jnp.bfloat16)),
        rtol=2e-3, atol=2e-3)

    # --- exercise multiple batch tiles with a ragged (masked) last tile ---
    y3 = jax.block_until_ready(
        mlp_forward(x2, params, max_batch_tile=8, min_split_batch=8))
    np.testing.assert_allclose(
        np.asarray(y3),
        np.asarray(mlp_forward_ref(x2, params, dtype=jnp.bfloat16)),
        rtol=2e-3, atol=2e-3)

    print("KERNEL_OK")
</pallas_src>

<mosaic_0001>
module attributes {stable_mosaic.version = 11 : i64} {
  func.func @mlp2_kernel(%arg0: i32, %arg1: i32, %arg2: memref<2x1024xbf16, #tpu.memory_space<vmem>>, %arg3: memref<1024x128xbf16, #tpu.memory_space<vmem>>, %arg4: memref<1x128xf32, #tpu.memory_space<vmem>>, %arg5: memref<128x128xbf16, #tpu.memory_space<vmem>>, %arg6: memref<1x128xf32, #tpu.memory_space<vmem>>, %arg7: memref<2x128xf32, #tpu.memory_space<vmem>>, %arg8: memref<2x128xf32, #tpu.memory_space<vmem>>) attributes {dimension_semantics = [#tpu.dimension_semantics<parallel>, #tpu.dimension_semantics<arbitrary>], iteration_bounds = array<i64: 1, 1>, scalar_prefetch = 0 : i64, scratch_operands = 1 : i64, tpu.core_type = #tpu.core_type<tc>, window_params = [{transform_indices = @transform_0, window_bounds = array<i64: 2, 1024>}, {pipeline_mode = #tpu.pipeline_mode<synchronous>, transform_indices = @transform_1, window_bounds = array<i64: 1024, 128>}, {pipeline_mode = #tpu.pipeline_mode<synchronous>, transform_indices = @transform_2, window_bounds = array<i64: 1, 128>}, {pipeline_mode = #tpu.pipeline_mode<synchronous>, transform_indices = @transform_3, window_bounds = array<i64: 128, 128>}, {pipeline_mode = #tpu.pipeline_mode<synchronous>, transform_indices = @transform_4, window_bounds = array<i64: 1, 128>}, {transform_indices = @transform_5, window_bounds = array<i64: 2, 128>}]} {
    %c0 = arith.constant 0 : index
    %c0_0 = arith.constant 0 : index
    %0 = vector.load %arg2[%c0, %c0_0] : memref<2x1024xbf16, #tpu.memory_space<vmem>>, vector<2x1024xbf16>
    %c0_1 = arith.constant 0 : index
    %c0_2 = arith.constant 0 : index
    %1 = vector.load %arg3[%c0_1, %c0_2] : memref<1024x128xbf16, #tpu.memory_space<vmem>>, vector<1024x128xbf16>
    %cst = arith.constant dense<0.000000e+00> : vector<2x128xf32>
    %2 = tpu.matmul %0, %1, %cst {dimension_numbers = #tpu.dot_dimension_numbers<[1], [0], [0], [1], [0, 0, 1, 1], [], []>} : vector<2x1024xbf16>, vector<1024x128xbf16>, vector<2x128xf32> -> vector<2x128xf32>
    %c0_i32 = arith.constant 0 : i32
    %3 = arith.cmpi eq, %arg1, %c0_i32 : i32
    %4 = arith.extui %3 : i1 to i32
    %c0_i32_3 = arith.constant 0 : i32
    %5 = arith.cmpi ne, %4, %c0_i32_3 : i32
    scf.if %5 {
      %c0_8 = arith.constant 0 : index
      %c0_9 = arith.constant 0 : index
      %12 = vector.load %arg8[%c0_8, %c0_9] : memref<2x128xf32, #tpu.memory_space<vmem>>, vector<2x128xf32>
      tpu.vector_store %arg8[%c0_8, %c0_9], %2 {strides = array<i32>} : memref<2x128xf32, #tpu.memory_space<vmem>>, vector<2x128xf32>,
    } else {
    }
    %c0_i32_4 = arith.constant 0 : i32
    %6 = arith.cmpi sgt, %arg1, %c0_i32_4 : i32
    %7 = arith.extui %6 : i1 to i32
    %c0_i32_5 = arith.constant 0 : i32
    %8 = arith.cmpi ne, %7, %c0_i32_5 : i32
    scf.if %8 {
      %c0_8 = arith.constant 0 : index
      %c0_9 = arith.constant 0 : index
      %12 = vector.load %arg8[%c0_8, %c0_9] : memref<2x128xf32, #tpu.memory_space<vmem>>, vector<2x128xf32>
      %13 = arith.addf %12, %2 : vector<2x128xf32>
      %c0_10 = arith.constant 0 : index
      %c0_11 = arith.constant 0 : index
      %14 = vector.load %arg8[%c0_10, %c0_11] : memref<2x128xf32, #tpu.memory_space<vmem>>, vector<2x128xf32>
      tpu.vector_store %arg8[%c0_10, %c0_11], %13 {strides = array<i32>} : memref<2x128xf32, #tpu.memory_space<vmem>>, vector<2x128xf32>,
    } else {
    }
    %c0_i32_6 = arith.constant 0 : i32
    %9 = arith.cmpi eq, %arg1, %c0_i32_6 : i32
    %10 = arith.extui %9 : i1 to i32
    %c0_i32_7 = arith.constant 0 : i32
    %11 = arith.cmpi ne, %10, %c0_i32_7 : i32
    scf.if %11 {
      %c0_8 = arith.constant 0 : index
      %c0_9 = arith.constant 0 : index
      %12 = vector.load %arg8[%c0_8, %c0_9] : memref<2x128xf32, #tpu.memory_space<vmem>>, vector<2x128xf32>
      %c0_10 = arith.constant 0 : index
      %c0_11 = arith.constant 0 : index
      %13 = vector.load %arg4[%c0_10, %c0_11] : memref<1x128xf32, #tpu.memory_space<vmem>>, vector<1x128xf32>
      %14 = vector.broadcast %13 : vector<1x128xf32> to vector<2x128xf32>
      %15 = arith.addf %12, %14 : vector<2x128xf32>
      %16 = math.tanh %15 : vector<2x128xf32>
      %17 = arith.truncf %16 : vector<2x128xf32> to vector<2x128xbf16>
      %c0_12 = arith.constant 0 : index
      %c0_13 = arith.constant 0 : index
      %18 = vector.load %arg5[%c0_12, %c0_13] : memref<128x128xbf16, #tpu.memory_space<vmem>>, vector<128x128xbf16>
      %cst_14 = arith.constant dense<0.000000e+00> : vector<2x128xf32>
      %19 = tpu.matmul %17, %18, %cst_14 {dimension_numbers = #tpu.dot_dimension_numbers<[1], [0], [0], [1], [0, 0, 1, 1], [], []>} : vector<2x128xbf16>, vector<128x128xbf16>, vector<2x128xf32> -> vector<2x128xf32>
      %c0_15 = arith.constant 0 : index
      %c0_16 = arith.constant 0 : index
      %20 = vector.load %arg6[%c0_15, %c0_16] : memref<1x128xf32, #tpu.memory_space<vmem>>, vector<1x128xf32>
      %21 = vector.broadcast %20 : vector<1x128xf32> to vector<2x128xf32>
      %22 = arith.addf %19, %21 : vector<2x128xf32>
      %23 = math.tanh %22 : vector<2x128xf32>
      %c0_17 = arith.constant 0 : index
      %c0_18 = arith.constant 0 : index
      %24 = vector.load %arg7[%c0_17, %c0_18] : memref<2x128xf32, #tpu.memory_space<vmem>>, vector<2x128xf32>
      tpu.vector_store %arg7[%c0_17, %c0_18], %23 {strides = array<i32>} : memref<2x128xf32, #tpu.memory_space<vmem>>, vector<2x128xf32>,
    } else {
    }
    return
  }
  func.func @transform_0(%arg0: i32, %arg1: i32) -> (i32, i32) {
    %c0_i32 = arith.constant 0 : i32
    return %arg0, %arg1 : i32, i32
  }
  func.func @transform_1(%arg0: i32, %arg1: i32) -> (i32, i32) {
    %c0_i32 = arith.constant 0 : i32
    %c0_i32_0 = arith.constant 0 : i32
    return %arg1, %c0_i32 : i32, i32
  }
  func.func @transform_2(%arg0: i32, %arg1: i32) -> (i32, i32) {
    %c0_i32 = arith.constant 0 : i32
    %c0_i32_0 = arith.constant 0 : i32
    %c0_i32_1 = arith.constant 0 : i32
    return %c0_i32, %c0_i32_0 : i32, i32
  }
  func.func @transform_3(%arg0: i32, %arg1: i32) -> (i32, i32) {
    %c0_i32 = arith.constant 0 : i32
    %c0_i32_0 = arith.constant 0 : i32
    %c0_i32_1 = arith.constant 0 : i32
    return %c0_i32, %c0_i32_0 : i32, i32
  }
  func.func @transform_4(%arg0: i32, %arg1: i32) -> (i32, i32) {
    %c0_i32 = arith.constant 0 : i32
    %c0_i32_0 = arith.constant 0 : i32
    %c0_i32_1 = arith.constant 0 : i32
    return %c0_i32, %c0_i32_0 : i32, i32
  }
  func.func @transform_5(%arg0: i32, %arg1: i32) -> (i32, i32) {
    %c0_i32 = arith.constant 0 : i32
    %c0_i32_0 = arith.constant 0 : i32
    return %arg0, %c0_i32 : i32, i32
  }
}

</mosaic_0001>

<llo_original>
// kernel: mlp_forward.1
$region0: #{mlp_forward.1}
  #allocation0 [shape = 'u32[]', space=smem, size = 0x4, offset = 0x4, fixed_abs, tag = 'smem constant byte address 0x4 - core index']
  #allocation1 [shape = 'u32[144,128]{1,0:T(1,128)}', space=vmem, size = 0x12000, scoped, tag = 'internal scratch']
  #allocation2 [shape = 'f32[2,128]{1,0:T(2,128)}', space=vmem, size = 0x400, scoped, tag = 'scratch operand']
  %s0 = inlined_call_operand.vmem [shape: bf16[2,1024], index: 0, kind: input, shape index: {}]
  %s1 = inlined_call_operand.vmem [shape: bf16[1024,128], index: 1, kind: input, shape index: {}]
  %s2 = inlined_call_operand.vmem [shape: f32[1,128], index: 2, kind: input, shape index: {}]
  %s3 = inlined_call_operand.vmem [shape: bf16[128,128], index: 3, kind: input, shape index: {}]
  %s4 = inlined_call_operand.vmem [shape: f32[1,128], index: 4, kind: input, shape index: {}]
  %s5 = inlined_call_operand.hbm [shape: f32[2,128], index: 5, kind: output, shape index: {}]
  %s6 = sld [smem:[#allocation0]]
  $region42: #{mlp_forward.1} parent=0
    _
  %s8 = ssub.s32 1, %s6
  %s9 = scalar_select 0, %s8, %s6
  $region1: #{mlp_forward.1} parent=0
    #allocation3 [shape = 'u8[1024]{0}', space=vmem, size = 0x400, scoped, tag = 'output window, operand 0, single buffered']
    #allocation4 [shape = 's32[1]{0}', space=sflag, size = 0x4, scoped, tag = 'scoped memory for mlp_forward.1']
    %10 = vsyncpa [#allocation4], 0
    // Predicated region
    $region2: #{mlp_forward.1} parent=1 // pred_check
      _
    $region3: #{mlp_forward.1} parent=1 // pred_check_branch
      %12 = sbr.rel (0) target = $region5
    $region4: #{mlp_forward.1} parent=1 // pred_region
      _
    $region5: #{mlp_forward.1} parent=1 // pred_fallthru
      _
    // Predicated region
    $region6: #{mlp_forward.1} parent=1 // pred_check
      _
    $region7: #{mlp_forward.1} parent=1 // pred_check_branch
      %14 = sbr.rel (0) target = $region9
    $region8: #{mlp_forward.1} parent=1 // pred_region
      _
    $region9: #{mlp_forward.1} parent=1 // pred_fallthru
      _
    // Predicated region
    $region10: #{mlp_forward.1} parent=1 // pred_check
      _
    $region11: #{mlp_forward.1} parent=1 // pred_check_branch
      %16 = sbr.rel (0) target = $region13
    $region12: #{mlp_forward.1} parent=1 // pred_region
      _
    $region13: #{mlp_forward.1} parent=1 // pred_fallthru
      _
    // Predicated region
    $region14: #{mlp_forward.1} parent=1 // pred_check
      _
    $region15: #{mlp_forward.1} parent=1 // pred_check_branch
      %18 = sbr.rel (0) target = $region17
    $region16: #{mlp_forward.1} parent=1 // pred_region
      _
    $region17: #{mlp_forward.1} parent=1 // pred_fallthru
      _
    // Predicated region
    $region18: #{mlp_forward.1} parent=1 // pred_check
      _
    $region19: #{mlp_forward.1} parent=1 // pred_check_branch
      %20 = sbr.rel (0) target = $region21
    $region20: #{mlp_forward.1} parent=1 // pred_region
      _
    $region21: #{mlp_forward.1} parent=1 // pred_fallthru
      _
    %v22 = vld [vmem:[%s0] sm:$0xff]
    %v23 = vld [vmem:[%s1] sm:$0xf]
    %v24 = vld [vmem:[%s1 + $0x4] sm:$0xf]
    %v25 = vld [vmem:[%s1 + $0x8] sm:$0xf]
    %v26 = vld [vmem:[%s1 + $0xc] sm:$0xf]
    %v27 = vld [vmem:[%s1 + $0x10] sm:$0xf]
    %v28 = vld [vmem:[%s1 + $0x14] sm:$0xf]
    %v29 = vld [vmem:[%s1 + $0x18] sm:$0xf]
    %v30 = vld [vmem:[%s1 + $0x1c] sm:$0xf]
    %v31 = vld [vmem:[%s1 + $0x20] sm:$0xf]
    %v32 = vld [vmem:[%s1 + $0x24] sm:$0xf]
    %v33 = vld [vmem:[%s1 + $0x28] sm:$0xf]
    %v34 = vld [vmem:[%s1 + $0x2c] sm:$0xf]
    %v35 = vld [vmem:[%s1 + $0x30] sm:$0xf]
    %v36 = vld [vmem:[%s1 + $0x34] sm:$0xf]
    %v37 = vld [vmem:[%s1 + $0x38] sm:$0xf]
    %v38 = vld [vmem:[%s1 + $0x3c] sm:$0xf]
    %v39 = vld [vmem:[%s1 + $0x40] sm:$0xf]
    %v40 = vld [vmem:[%s1 + $0x44] sm:$0xf]
    %v41 = vld [vmem:[%s1 + $0x48] sm:$0xf]
    %v42 = vld [vmem:[%s1 + $0x4c] sm:$0xf]
    %v43 = vld [vmem:[%s1 + $0x50] sm:$0xf]
    %v44 = vld [vmem:[%s1 + $0x54] sm:$0xf]
    %v45 = vld [vmem:[%s1 + $0x58] sm:$0xf]
    %v46 = vld [vmem:[%s1 + $0x5c] sm:$0xf]
    %v47 = vld [vmem:[%s1 + $0x60] sm:$0xf]
    %v48 = vld [vmem:[%s1 + $0x64] sm:$0xf]
    %v49 = vld [vmem:[%s1 + $0x68] sm:$0xf]
    %v50 = vld [vmem:[%s1 + $0x6c] sm:$0xf]
    %v51 = vld [vmem:[%s1 + $0x70] sm:$0xf]
    %v52 = vld [vmem:[%s1 + $0x74] sm:$0xf]
    %v53 = vld [vmem:[%s1 + $0x78] sm:$0xf]
    %v54 = vld [vmem:[%s1 + $0x7c] sm:$0xf]
    %v55 = vld [vmem:[%s1 + $0x80] sm:$0xf]
    %v56 = vld [vmem:[%s1 + $0x84] sm:$0xf]
    %v57 = vld [vmem:[%s1 + $0x88] sm:$0xf]
    %v58 = vld [vmem:[%s1 + $0x8c] sm:$0xf]
    %v59 = vld [vmem:[%s1 + $0x90] sm:$0xf]
    %v60 = vld [vmem:[%s1 + $0x94] sm:$0xf]
    %v61 = vld [vmem:[%s1 + $0x98] sm:$0xf]
    %v62 = vld [vmem:[%s1 + $0x9c] sm:$0xf]
    %v63 = vld [vmem:[%s1 + $0xa0] sm:$0xf]
    %v64 = vld [vmem:[%s1 + $0xa4] sm:$0xf]
    %v65 = vld [vmem:[%s1 + $0xa8] sm:$0xf]
    %v66 = vld [vmem:[%s1 + $0xac] sm:$0xf]
    %v67 = vld [vmem:[%s1 + $0xb0] sm:$0xf]
    %v68 = vld [vmem:[%s1 + $0xb4] sm:$0xf]
    %v69 = vld [vmem:[%s1 + $0xb8] sm:$0xf]
    %v70 = vld [vmem:[%s1 + $0xbc] sm:$0xf]
    %v71 = vld [vmem:[%s1 + $0xc0] sm:$0xf]
    %v72 = vld [vmem:[%s1 + $0xc4] sm:$0xf]
    %v73 = vld [vmem:[%s1 + $0xc8] sm:$0xf]
    %v74 = vld [vmem:[%s1 + $0xcc] sm:$0xf]
    %v75 = vld [vmem:[%s1 + $0xd0] sm:$0xf]
    %v76 = vld [vmem:[%s1 + $0xd4] sm:$0xf]
    %v77 = vld [vmem:[%s1 + $0xd8] sm:$0xf]
    %v78 = vld [vmem:[%s1 + $0xdc] sm:$0xf]
    %v79 = vld [vmem:[%s1 + $0xe0] sm:$0xf]
    %v80 = vld [vmem:[%s1 + $0xe4] sm:$0xf]
    %v81 = vld [vmem:[%s1 + $0xe8] sm:$0xf]
    %v82 = vld [vmem:[%s1 + $0xec] sm:$0xf]
    %v83 = vld [vmem:[%s1 + $0xf0] sm:$0xf]
    %v84 = vld [vmem:[%s1 + $0xf4] sm:$0xf]
    %v85 = vld [vmem:[%s1 + $0xf8] sm:$0xf]
    %v86 = vld [vmem:[%s1 + $0xfc] sm:$0xf]
    %v87 = vld [vmem:[%s1 + $0x100] sm:$0xf]
    %v88 = vld [vmem:[%s1 + $0x104] sm:$0xf]
    %v89 = vld [vmem:[%s1 + $0x108] sm:$0xf]
    %v90 = vld [vmem:[%s1 + $0x10c] sm:$0xf]
    %v91 = vld [vmem:[%s1 + $0x110] sm:$0xf]
    %v92 = vld [vmem:[%s1 + $0x114] sm:$0xf]
    %v93 = vld [vmem:[%s1 + $0x118] sm:$0xf]
    %v94 = vld [vmem:[%s1 + $0x11c] sm:$0xf]
    %v95 = vld [vmem:[%s1 + $0x120] sm:$0xf]
    %v96 = vld [vmem:[%s1 + $0x124] sm:$0xf]
    %v97 = vld [vmem:[%s1 + $0x128] sm:$0xf]
    %v98 = vld [vmem:[%s1 + $0x12c] sm:$0xf]
    %v99 = vld [vmem:[%s1 + $0x130] sm:$0xf]
    %v100 = vld [vmem:[%s1 + $0x134] sm:$0xf]
    %v101 = vld [vmem:[%s1 + $0x138] sm:$0xf]
    %v102 = vld [vmem:[%s1 + $0x13c] sm:$0xf]
    %v103 = vld [vmem:[%s1 + $0x140] sm:$0xf]
    %v104 = vld [vmem:[%s1 + $0x144] sm:$0xf]
    %v105 = vld [vmem:[%s1 + $0x148] sm:$0xf]
    %v106 = vld [vmem:[%s1 + $0x14c] sm:$0xf]
    %v107 = vld [vmem:[%s1 + $0x150] sm:$0xf]
    %v108 = vld [vmem:[%s1 + $0x154] sm:$0xf]
    %v109 = vld [vmem:[%s1 + $0x158] sm:$0xf]
    %v110 = vld [vmem:[%s1 + $0x15c] sm:$0xf]
    %v111 = vld [vmem:[%s1 + $0x160] sm:$0xf]
    %v112 = vld [vmem:[%s1 + $0x164] sm:$0xf]
    %v113 = vld [vmem:[%s1 + $0x168] sm:$0xf]
    %v114 = vld [vmem:[%s1 + $0x16c] sm:$0xf]
    %v115 = vld [vmem:[%s1 + $0x170] sm:$0xf]
    %v116 = vld [vmem:[%s1 + $0x174] sm:$0xf]
    %v117 = vld [vmem:[%s1 + $0x178] sm:$0xf]
    %v118 = vld [vmem:[%s1 + $0x17c] sm:$0xf]
    %v119 = vld [vmem:[%s1 + $0x180] sm:$0xf]
    %v120 = vld [vmem:[%s1 + $0x184] sm:$0xf]
    %v121 = vld [vmem:[%s1 + $0x188] sm:$0xf]
    %v122 = vld [vmem:[%s1 + $0x18c] sm:$0xf]
    %v123 = vld [vmem:[%s1 + $0x190] sm:$0xf]
    %v124 = vld [vmem:[%s1 + $0x194] sm:$0xf]
    %v125 = vld [vmem:[%s1 + $0x198] sm:$0xf]
    %v126 = vld [vmem:[%s1 + $0x19c] sm:$0xf]
    %v127 = vld [vmem:[%s1 + $0x1a0] sm:$0xf]
    %v128 = vld [vmem:[%s1 + $0x1a4] sm:$0xf]
    %v129 = vld [vmem:[%s1 + $0x1a8] sm:$0xf]
    %v130 = vld [vmem:[%s1 + $0x1ac] sm:$0xf]
    %v131 = vld [vmem:[%s1 + $0x1b0] sm:$0xf]
    %v132 = vld [vmem:[%s1 + $0x1b4] sm:$0xf]
    %v133 = vld [vmem:[%s1 + $0x1b8] sm:$0xf]
    %v134 = vld [vmem:[%s1 + $0x1bc] sm:$0xf]
    %v135 = vld [vmem:[%s1 + $0x1c0] sm:$0xf]
    %v136 = vld [vmem:[%s1 + $0x1c4] sm:$0xf]
    %v137 = vld [vmem:[%s1 + $0x1c8] sm:$0xf]
    %v138 = vld [vmem:[%s1 + $0x1cc] sm:$0xf]
    %v139 = vld [vmem:[%s1 + $0x1d0] sm:$0xf]
    %v140 = vld [vmem:[%s1 + $0x1d4] sm:$0xf]
    %v141 = vld [vmem:[%s1 + $0x1d8] sm:$0xf]
    %v142 = vld [vmem:[%s1 + $0x1dc] sm:$0xf]
    %v143 = vld [vmem:[%s1 + $0x1e0] sm:$0xf]
    %v144 = vld [vmem:[%s1 + $0x1e4] sm:$0xf]
    %v145 = vld [vmem:[%s1 + $0x1e8] sm:$0xf]
    %v146 = vld [vmem:[%s1 + $0x1ec] sm:$0xf]
    %v147 = vld [vmem:[%s1 + $0x1f0] sm:$0xf]
    %v148 = vld [vmem:[%s1 + $0x1f4] sm:$0xf]
    %v149 = vld [vmem:[%s1 + $0x1f8] sm:$0xf]
    %v150 = vld [vmem:[%s1 + $0x1fc] sm:$0xf]
    %v152 = vcombine.high %v22, %v22
    %v154 = vunpack.c.l.s4 1966171168
    %v155 = vunpack.c.0.s8 %v154
    %v156 = vlaneseq
    %v157 = vshrl.u32 %v156, 7
    %v158 = vsub.s32 %v155, %v157
    %v159 = vrot.slane %v22, %v158
    %v161 = vunpack.c.l.s4 1966171168
    %v162 = vunpack.c.0.s8 %v161
    %v163 = vlaneseq
    %v164 = vshrl.u32 %v163, 7
    %v165 = vsub.s32 %v162, %v164
    %v166 = vrot.slane %v152, %v165
    %v167 = vcombine.high %v159, %v159
    %v168 = vcombine.high %v166, %v166
    %v170 = vunpack.c.l.s4 1966171168
    %v171 = vunpack.c.0.s8 %v170
    %v172 = vlaneseq
    %v173 = vshrl.u32 %v172, 7
    %v174 = vsub.s32 %v171, %v173
    %v175 = vrot.slane %v159, %v174
    %v177 = vunpack.c.l.s4 1966171168
    %v178 = vunpack.c.0.s8 %v177
    %v179 = vlaneseq
    %v180 = vshrl.u32 %v179, 7
    %v181 = vsub.s32 %v178, %v180
    %v182 = vrot.slane %v166, %v181
    %v184 = vunpack.c.l.s4 1966171168
    %v185 = vunpack.c.0.s8 %v184
    %v186 = vlaneseq
    %v187 = vshrl.u32 %v186, 7
    %v188 = vsub.s32 %v185, %v187
    %v189 = vrot.slane %v167, %v188
    %v191 = vunpack.c.l.s4 1966171168
    %v192 = vunpack.c.0.s8 %v191
    %v193 = vlaneseq
    %v194 = vshrl.u32 %v193, 7
    %v195 = vsub.s32 %v192, %v194
    %v196 = vrot.slane %v168, %v195
    %v197 = vcombine.high %v175, %v175
    %v198 = vcombine.high %v182, %v182
    %v199 = vcombine.high %v189, %v189
    %v200 = vcombine.high %v196, %v196
    %v337 = vunpack.c.l.b16 %v23
    %v338 = vunpack.c.l.b16 %v24
    %v339 = vunpack.c.l.b16 %v25
    %v340 = vunpack.c.l.b16 %v26
    %v341 = vunpack.c.l.b16 %v27
    %v342 = vunpack.c.l.b16 %v28
    %v343 = vunpack.c.l.b16 %v29
    %v344 = vunpack.c.l.b16 %v30
    %v345 = vunpack.c.l.b16 %v31
    %v346 = vunpack.c.l.b16 %v32
    %v347 = vunpack.c.l.b16 %v33
    %v348 = vunpack.c.l.b16 %v34
    %v349 = vunpack.c.l.b16 %v35
    %v350 = vunpack.c.l.b16 %v36
    %v351 = vunpack.c.l.b16 %v37
    %v352 = vunpack.c.l.b16 %v38
    %v353 = vunpack.c.l.b16 %v39
    %v354 = vunpack.c.l.b16 %v40
    %v355 = vunpack.c.l.b16 %v41
    %v356 = vunpack.c.l.b16 %v42
    %v357 = vunpack.c.l.b16 %v43
    %v358 = vunpack.c.l.b16 %v44
    %v359 = vunpack.c.l.b16 %v45
    %v360 = vunpack.c.l.b16 %v46
    %v361 = vunpack.c.l.b16 %v47
    %v362 = vunpack.c.l.b16 %v48
    %v363 = vunpack.c.l.b16 %v49
    %v364 = vunpack.c.l.b16 %v50
    %v365 = vunpack.c.l.b16 %v51
    %v366 = vunpack.c.l.b16 %v52
    %v367 = vunpack.c.l.b16 %v53
    %v368 = vunpack.c.l.b16 %v54
    %v369 = vunpack.c.l.b16 %v55
    %v370 = vunpack.c.l.b16 %v56
    %v371 = vunpack.c.l.b16 %v57
    %v372 = vunpack.c.l.b16 %v58
    %v373 = vunpack.c.l.b16 %v59
    %v374 = vunpack.c.l.b16 %v60
    %v375 = vunpack.c.l.b16 %v61
    %v376 = vunpack.c.l.b16 %v62
    %v377 = vunpack.c.l.b16 %v63
    %v378 = vunpack.c.l.b16 %v64
    %v379 = vunpack.c.l.b16 %v65
    %v380 = vunpack.c.l.b16 %v66
    %v381 = vunpack.c.l.b16 %v67
    %v382 = vunpack.c.l.b16 %v68
    %v383 = vunpack.c.l.b16 %v69
    %v384 = vunpack.c.l.b16 %v70
    %v385 = vunpack.c.l.b16 %v71
    %v386 = vunpack.c.l.b16 %v72
    %v387 = vunpack.c.l.b16 %v73
    %v388 = vunpack.c.l.b16 %v74
    %v389 = vunpack.c.l.b16 %v75
    %v390 = vunpack.c.l.b16 %v76
    %v391 = vunpack.c.l.b16 %v77
    %v392 = vunpack.c.l.b16 %v78
    %v393 = vunpack.c.l.b16 %v79
    %v394 = vunpack.c.l.b16 %v80
    %v395 = vunpack.c.l.b16 %v81
    %v396 = vunpack.c.l.b16 %v82
    %v397 = vunpack.c.l.b16 %v83
    %v398 = vunpack.c.l.b16 %v84
    %v399 = vunpack.c.l.b16 %v85
    %v400 = vunpack.c.l.b16 %v86
    %v401 = vunpack.c.l.b16 %v87
    %v402 = vunpack.c.l.b16 %v88
    %v403 = vunpack.c.l.b16 %v89
    %v404 = vunpack.c.l.b16 %v90
    %v405 = vunpack.c.l.b16 %v91
    %v406 = vunpack.c.l.b16 %v92
    %v407 = vunpack.c.l.b16 %v93
    %v408 = vunpack.c.l.b16 %v94
    %v409 = vunpack.c.l.b16 %v95
    %v410 = vunpack.c.l.b16 %v96
    %v411 = vunpack.c.l.b16 %v97
    %v412 = vunpack.c.l.b16 %v98
    %v413 = vunpack.c.l.b16 %v99
    %v414 = vunpack.c.l.b16 %v100
    %v415 = vunpack.c.l.b16 %v101
    %v416 = vunpack.c.l.b16 %v102
    %v417 = vunpack.c.l.b16 %v103
    %v418 = vunpack.c.l.b16 %v104
    %v419 = vunpack.c.l.b16 %v105
    %v420 = vunpack.c.l.b16 %v106
    %v421 = vunpack.c.l.b16 %v107
    %v422 = vunpack.c.l.b16 %v108
    %v423 = vunpack.c.l.b16 %v109
    %v424 = vunpack.c.l.b16 %v110
    %v425 = vunpack.c.l.b16 %v111
    %v426 = vunpack.c.l.b16 %v112
    %v427 = vunpack.c.l.b16 %v113
    %v428 = vunpack.c.l.b16 %v114
    %v429 = vunpack.c.l.b16 %v115
    %v430 = vunpack.c.l.b16 %v116
    %v431 = vunpack.c.l.b16 %v117
    %v432 = vunpack.c.l.b16 %v118
    %v433 = vunpack.c.l.b16 %v119
    %v434 = vunpack.c.l.b16 %v120
    %v435 = vunpack.c.l.b16 %v121
    %v436 = vunpack.c.l.b16 %v122
    %v437 = vunpack.c.l.b16 %v123
    %v438 = vunpack.c.l.b16 %v124
    %v439 = vunpack.c.l.b16 %v125
    %v440 = vunpack.c.l.b16 %v126
    %v441 = vunpack.c.l.b16 %v127
    %v442 = vunpack.c.l.b16 %v128
    %v443 = vunpack.c.l.b16 %v129
    %v444 = vunpack.c.l.b16 %v130
    %v445 = vunpack.c.l.b16 %v131
    %v446 = vunpack.c.l.b16 %v132
    %v447 = vunpack.c.l.b16 %v133
    %v448 = vunpack.c.l.b16 %v134
    %v449 = vunpack.c.l.b16 %v135
    %v450 = vunpack.c.l.b16 %v136
    %v451 = vunpack.c.l.b16 %v137
    %v452 = vunpack.c.l.b16 %v138
    %v453 = vunpack.c.l.b16 %v139
    %v454 = vunpack.c.l.b16 %v140
    %v455 = vunpack.c.l.b16 %v141
    %v456 = vunpack.c.l.b16 %v142
    %v457 = vunpack.c.l.b16 %v143
    %v458 = vunpack.c.l.b16 %v144
    %v459 = vunpack.c.l.b16 %v145
    %v460 = vunpack.c.l.b16 %v146
    %v461 = vunpack.c.l.b16 %v147
    %v462 = vunpack.c.l.b16 %v148
    %v463 = vunpack.c.l.b16 %v149
    %v464 = vunpack.c.l.b16 %v150
    %v465 = vpack.c.b16 %v338, %v337
    %v466 = vpack.c.b16 %v340, %v339
    %v467 = vpack.c.b16 %v342, %v341
    %v468 = vpack.c.b16 %v344, %v343
    %v469 = vpack.c.b16 %v346, %v345
    %v470 = vpack.c.b16 %v348, %v347
    %v471 = vpack.c.b16 %v350, %v349
    %v472 = vpack.c.b16 %v352, %v351
    %v473 = vpack.c.b16 %v354, %v353
    %v474 = vpack.c.b16 %v356, %v355
    %v475 = vpack.c.b16 %v358, %v357
    %v476 = vpack.c.b16 %v360, %v359
    %v477 = vpack.c.b16 %v362, %v361
    %v478 = vpack.c.b16 %v364, %v363
    %v479 = vpack.c.b16 %v366, %v365
    %v480 = vpack.c.b16 %v368, %v367
    %v481 = vpack.c.b16 %v370, %v369
    %v482 = vpack.c.b16 %v372, %v371
    %v483 = vpack.c.b16 %v374, %v373
    %v484 = vpack.c.b16 %v376, %v375
    %v485 = vpack.c.b16 %v378, %v377
    %v486 = vpack.c.b16 %v380, %v379
    %v487 = vpack.c.b16 %v382, %v381
    %v488 = vpack.c.b16 %v384, %v383
    %v489 = vpack.c.b16 %v386, %v385
    %v490 = vpack.c.b16 %v388, %v387
    %v491 = vpack.c.b16 %v390, %v389
    %v492 = vpack.c.b16 %v392, %v391
    %v493 = vpack.c.b16 %v394, %v393
    %v494 = vpack.c.b16 %v396, %v395
    %v495 = vpack.c.b16 %v398, %v397
    %v496 = vpack.c.b16 %v400, %v399
    %v497 = vpack.c.b16 %v402, %v401
    %v498 = vpack.c.b16 %v404, %v403
    %v499 = vpack.c.b16 %v406, %v405
    %v500 = vpack.c.b16 %v408, %v407
    %v501 = vpack.c.b16 %v410, %v409
    %v502 = vpack.c.b16 %v412, %v411
    %v503 = vpack.c.b16 %v414, %v413
    %v504 = vpack.c.b16 %v416, %v415
    %v505 = vpack.c.b16 %v418, %v417
    %v506 = vpack.c.b16 %v420, %v419
    %v507 = vpack.c.b16 %v422, %v421
    %v508 = vpack.c.b16 %v424, %v423
    %v509 = vpack.c.b16 %v426, %v425
    %v510 = vpack.c.b16 %v428, %v427
    %v511 = vpack.c.b16 %v430, %v429
    %v512 = vpack.c.b16 %v432, %v431
    %v513 = vpack.c.b16 %v434, %v433
    %v514 = vpack.c.b16 %v436, %v435
    %v515 = vpack.c.b16 %v438, %v437
    %v516 = vpack.c.b16 %v440, %v439
    %v517 = vpack.c.b16 %v442, %v441
    %v518 = vpack.c.b16 %v444, %v443
    %v519 = vpack.c.b16 %v446, %v445
    %v520 = vpack.c.b16 %v448, %v447
    %v521 = vpack.c.b16 %v450, %v449
    %v522 = vpack.c.b16 %v452, %v451
    %v523 = vpack.c.b16 %v454, %v453
    %v524 = vpack.c.b16 %v456, %v455
    %v525 = vpack.c.b16 %v458, %v457
    %v526 = vpack.c.b16 %v460, %v459
    %v527 = vpack.c.b16 %v462, %v461
    %v528 = vpack.c.b16 %v464, %v463
    %593 = vmatprep.subr.bf16.mxu0 0
    %594 = vmatpush1.bf16.msra.mxu0 %v465
    %595 = vmatprep.subr.bf16.mxu0 0
    %596 = vmatpush1.bf16.msra.mxu0 %v466
    %597 = vmatprep.subr.bf16.mxu0 0
    %598 = vmatpush1.bf16.msra.mxu0 %v467
    %599 = vmatprep.subr.bf16.mxu0 0
    %600 = vmatpush1.bf16.msra.mxu0 %v468
    %601 = vmatprep.subr.bf16.mxu0 0
    %602 = vmatpush1.bf16.msra.mxu0 %v469
    %603 = vmatprep.subr.bf16.mxu0 0
    %604 = vmatpush1.bf16.msra.mxu0 %v470
    %605 = vmatprep.subr.bf16.mxu0 0
    %606 = vmatpush1.bf16.msra.mxu0 %v471
    %607 = vmatprep.subr.bf16.mxu0 0
    %608 = vmatpush1.bf16.msra.mxu0 %v472
    %609 = vmatprep.subr.bf16.mxu0 0
    %610 = vmatpush1.bf16.msra.mxu0 %v473
    %611 = vmatprep.subr.bf16.mxu0 0
    %612 = vmatpush1.bf16.msra.mxu0 %v474
    %613 = vmatprep.subr.bf16.mxu0 0
    %614 = vmatpush1.bf16.msra.mxu0 %v475
    %615 = vmatprep.subr.bf16.mxu0 0
    %616 = vmatpush1.bf16.msra.mxu0 %v476
    %617 = vmatprep.subr.bf16.mxu0 0
    %618 = vmatpush1.bf16.msra.mxu0 %v477
    %619 = vmatprep.subr.bf16.mxu0 0
    %620 = vmatpush1.bf16.msra.mxu0 %v478
    %621 = vmatprep.subr.bf16.mxu0 0
    %622 = vmatpush1.bf16.msra.mxu0 %v479
    %623 = vmatprep.subr.bf16.mxu0 0
    %624 = vmatpush1.bf16.msra.mxu0 %v480
    %625 = vmatprep.mubr.bf16.mxu0 %v189
    %626 = vmatmul.mubr.bf16.gmra.mrb[0].mxu0 %v175
    %v627 = vpop.f32.mrb[0].mxu0
    %v628 = vadd.f32 0.0, %v627
    %v629 = vpop.f32.mrb[0].mxu0
    %v630 = vpop.f32.mrb[0].mxu0
    %v631 = vpop.f32.mrb[0].mxu0
    %632 = vdwg.mxu0
    %633 = vmatprep.subr.bf16.mxu0 0
    %634 = vmatpush1.bf16.msra.mxu0 %v481
    %635 = vmatprep.subr.bf16.mxu0 0
    %636 = vmatpush1.bf16.msra.mxu0 %v482
    %637 = vmatprep.subr.bf16.mxu0 0
    %638 = vmatpush1.bf16.msra.mxu0 %v483
    %639 = vmatprep.subr.bf16.mxu0 0
    %640 = vmatpush1.bf16.msra.mxu0 %v484
    %641 = vmatprep.subr.bf16.mxu0 0
    %642 = vmatpush1.bf16.msra.mxu0 %v485
    %643 = vmatprep.subr.bf16.mxu0 0
    %644 = vmatpush1.bf16.msra.mxu0 %v486
    %645 = vmatprep.subr.bf16.mxu0 0
    %646 = vmatpush1.bf16.msra.mxu0 %v487
    %647 = vmatprep.subr.bf16.mxu0 0
    %648 = vmatpush1.bf16.msra.mxu0 %v488
    %649 = vmatprep.subr.bf16.mxu0 0
    %650 = vmatpush1.bf16.msra.mxu0 %v489
    %651 = vmatprep.subr.bf16.mxu0 0
    %652 = vmatpush1.bf16.msra.mxu0 %v490
    %653 = vmatprep.subr.bf16.mxu0 0
    %654 = vmatpush1.bf16.msra.mxu0 %v491
    %655 = vmatprep.subr.bf16.mxu0 0
    %656 = vmatpush1.bf16.msra.mxu0 %v492
    %657 = vmatprep.subr.bf16.mxu0 0
    %658 = vmatpush1.bf16.msra.mxu0 %v493
    %659 = vmatprep.subr.bf16.mxu0 0
    %660 = vmatpush1.bf16.msra.mxu0 %v494
    %661 = vmatprep.subr.bf16.mxu0 0
    %662 = vmatpush1.bf16.msra.mxu0 %v495
    %663 = vmatprep.subr.bf16.mxu0 0
    %664 = vmatpush1.bf16.msra.mxu0 %v496
    %665 = vmatprep.mubr.bf16.mxu0 %v199
    %666 = vmatmul.mubr.bf16.gmra.mrb[0].mxu0 %v197
    %v667 = vpop.f32.mrb[0].mxu0
    %v668 = vadd.f32 %v628, %v667
    %v669 = vpop.f32.mrb[0].mxu0
    %v670 = vpop.f32.mrb[0].mxu0
    %v671 = vpop.f32.mrb[0].mxu0
    %672 = vdwg.mxu0
    %673 = vmatprep.subr.bf16.mxu0 0
    %674 = vmatpush1.bf16.msra.mxu0 %v497
    %675 = vmatprep.subr.bf16.mxu0 0
    %676 = vmatpush1.bf16.msra.mxu0 %v498
    %677 = vmatprep.subr.bf16.mxu0 0
    %678 = vmatpush1.bf16.msra.mxu0 %v499
    %679 = vmatprep.subr.bf16.mxu0 0
    %680 = vmatpush1.bf16.msra.mxu0 %v500
    %681 = vmatprep.subr.bf16.mxu0 0
    %682 = vmatpush1.bf16.msra.mxu0 %v501
    %683 = vmatprep.subr.bf16.mxu0 0
    %684 = vmatpush1.bf16.msra.mxu0 %v502
    %685 = vmatprep.subr.bf16.mxu0 0
    %686 = vmatpush1.bf16.msra.mxu0 %v503
    %687 = vmatprep.subr.bf16.mxu0 0
    %688 = vmatpush1.bf16.msra.mxu0 %v504
    %689 = vmatprep.subr.bf16.mxu0 0
    %690 = vmatpush1.bf16.msra.mxu0 %v505
    %691 = vmatprep.subr.bf16.mxu0 0
    %692 = vmatpush1.bf16.msra.mxu0 %v506
    %693 = vmatprep.subr.bf16.mxu0 0
    %694 = vmatpush1.bf16.msra.mxu0 %v507
    %695 = vmatprep.subr.bf16.mxu0 0
    %696 = vmatpush1.bf16.msra.mxu0 %v508
    %697 = vmatprep.subr.bf16.mxu0 0
    %698 = vmatpush1.bf16.msra.mxu0 %v509
    %699 = vmatprep.subr.bf16.mxu0 0
    %700 = vmatpush1.bf16.msra.mxu0 %v510
    %701 = vmatprep.subr.bf16.mxu0 0
    %702 = vmatpush1.bf16.msra.mxu0 %v511
    %703 = vmatprep.subr.bf16.mxu0 0
    %704 = vmatpush1.bf16.msra.mxu0 %v512
    %705 = vmatprep.mubr.bf16.mxu0 %v196
    %706 = vmatmul.mubr.bf16.gmra.mrb[0].mxu0 %v182
    %v707 = vpop.f32.mrb[0].mxu0
    %v708 = vadd.f32 %v668, %v707
    %v709 = vpop.f32.mrb[0].mxu0
    %v710 = vpop.f32.mrb[0].mxu0
    %v711 = vpop.f32.mrb[0].mxu0
    %712 = vdwg.mxu0
    %713 = vmatprep.subr.bf16.mxu0 0
    %714 = vmatpush1.bf16.msra.mxu0 %v513
    %715 = vmatprep.subr.bf16.mxu0 0
    %716 = vmatpush1.bf16.msra.mxu0 %v514
    %717 = vmatprep.subr.bf16.mxu0 0
    %718 = vmatpush1.bf16.msra.mxu0 %v515
    %719 = vmatprep.subr.bf16.mxu0 0
    %720 = vmatpush1.bf16.msra.mxu0 %v516
    %721 = vmatprep.subr.bf16.mxu0 0
    %722 = vmatpush1.bf16.msra.mxu0 %v517
    %723 = vmatprep.subr.bf16.mxu0 0
    %724 = vmatpush1.bf16.msra.mxu0 %v518
    %725 = vmatprep.subr.bf16.mxu0 0
    %726 = vmatpush1.bf16.msra.mxu0 %v519
    %727 = vmatprep.subr.bf16.mxu0 0
    %728 = vmatpush1.bf16.msra.mxu0 %v520
    %729 = vmatprep.subr.bf16.mxu0 0
    %730 = vmatpush1.bf16.msra.mxu0 %v521
    %731 = vmatprep.subr.bf16.mxu0 0
    %732 = vmatpush1.bf16.msra.mxu0 %v522
    %733 = vmatprep.subr.bf16.mxu0 0
    %734 = vmatpush1.bf16.msra.mxu0 %v523
    %735 = vmatprep.subr.bf16.mxu0 0
    %736 = vmatpush1.bf16.msra.mxu0 %v524
    %737 = vmatprep.subr.bf16.mxu0 0
    %738 = vmatpush1.bf16.msra.mxu0 %v525
    %739 = vmatprep.subr.bf16.mxu0 0
    %740 = vmatpush1.bf16.msra.mxu0 %v526
    %741 = vmatprep.subr.bf16.mxu0 0
    %742 = vmatpush1.bf16.msra.mxu0 %v527
    %743 = vmatprep.subr.bf16.mxu0 0
    %744 = vmatpush1.bf16.msra.mxu0 %v528
    %745 = vmatprep.mubr.bf16.mxu0 %v200
    %746 = vmatmul.mubr.bf16.gmra.mrb[0].mxu0 %v198
    %v747 = vpop.f32.mrb[0].mxu0
    %v748 = vadd.f32 %v708, %v747
    %v749 = vpop.f32.mrb[0].mxu0
    %v750 = vpop.f32.mrb[0].mxu0
    %v751 = vpop.f32.mrb[0].mxu0
    %752 = vdwg.mxu0
    %p753 = scmp.eq.s32.totalorder 0, 0
    // Predicated region
    $region22: #{mlp_forward.1} parent=1 // pred_check
      %p754 = pneg %p753
    $region23: #{mlp_forward.1} parent=1 // pred_check_branch
      %756 = sbr.rel (%p754) target = $region25
    $region24: #{mlp_forward.1} parent=1 // pred_region
      %757 = vst [vmem:[#allocation2] sm:$0x3] %v748
    $region25: #{mlp_forward.1} parent=1 // pred_fallthru
      _
    %p758 = scmp.gt.s32.totalorder 0, 0
    // Predicated region
    $region26: #{mlp_forward.1} parent=1 // pred_check
      %p759 = pneg %p758
    $region27: #{mlp_forward.1} parent=1 // pred_check_branch
      %761 = sbr.rel (%p759) target = $region29
    $region28: #{mlp_forward.1} parent=1 // pred_region
      %v762 = vld [vmem:[#allocation2] sm:$0x3]
      %v763 = vadd.f32 %v762, %v748
      %764 = vst [vmem:[#allocation2] sm:$0x3] %v763
    $region29: #{mlp_forward.1} parent=1 // pred_fallthru
      _
    // Predicated region
    $region30: #{mlp_forward.1} parent=1 // pred_check
      %p765 = pneg %p753
    $region31: #{mlp_forward.1} parent=1 // pred_check_branch
      %767 = sbr.rel (%p765) target = $region33
    $region32: #{mlp_forward.1} parent=1 // pred_region
      %v768 = vld [vmem:[#allocation2] sm:$0x3]
      %v769 = vld [vmem:[%s2] sm:$0x1]
      %v771 = vlaneseq
      %v772 = vshrl.u32 %v771, 7
      %v773 = vsub.s32 0, %v772
      %v774 = vrot.slane %v769, %v773
      %v776 = vadd.f32 %v768, %v774
      %v777 = vtanh.pop %v776
      %v778 = vpack.c.bf16 %v777, %v777
      %v779 = vld [vmem:[%s3] sm:$0xf]
      %v780 = vld [vmem:[%s3 + $0x4] sm:$0xf]
      %v781 = vld [vmem:[%s3 + $0x8] sm:$0xf]
      %v782 = vld [vmem:[%s3 + $0xc] sm:$0xf]
      %v783 = vld [vmem:[%s3 + $0x10] sm:$0xf]
      %v784 = vld [vmem:[%s3 + $0x14] sm:$0xf]
      %v785 = vld [vmem:[%s3 + $0x18] sm:$0xf]
      %v786 = vld [vmem:[%s3 + $0x1c] sm:$0xf]
      %v787 = vld [vmem:[%s3 + $0x20] sm:$0xf]
      %v788 = vld [vmem:[%s3 + $0x24] sm:$0xf]
      %v789 = vld [vmem:[%s3 + $0x28] sm:$0xf]
      %v790 = vld [vmem:[%s3 + $0x2c] sm:$0xf]
      %v791 = vld [vmem:[%s3 + $0x30] sm:$0xf]
      %v792 = vld [vmem:[%s3 + $0x34] sm:$0xf]
      %v793 = vld [vmem:[%s3 + $0x38] sm:$0xf]
      %v794 = vld [vmem:[%s3 + $0x3c] sm:$0xf]
      %v795 = vld [vmem:[%s4] sm:$0x1]
      %v797 = vlaneseq
      %v798 = vshrl.u32 %v797, 7
      %v799 = vsub.s32 0, %v798
      %v800 = vrot.slane %v795, %v799
      %v818 = vunpack.c.l.b16 %v779
      %v819 = vunpack.c.l.b16 %v780
      %v820 = vunpack.c.l.b16 %v781
      %v821 = vunpack.c.l.b16 %v782
      %v822 = vunpack.c.l.b16 %v783
      %v823 = vunpack.c.l.b16 %v784
      %v824 = vunpack.c.l.b16 %v785
      %v825 = vunpack.c.l.b16 %v786
      %v826 = vunpack.c.l.b16 %v787
      %v827 = vunpack.c.l.b16 %v788
      %v828 = vunpack.c.l.b16 %v789
      %v829 = vunpack.c.l.b16 %v790
      %v830 = vunpack.c.l.b16 %v791
      %v831 = vunpack.c.l.b16 %v792
      %v832 = vunpack.c.l.b16 %v793
      %v833 = vunpack.c.l.b16 %v794
      %v834 = vpack.c.b16 %v819, %v818
      %v835 = vpack.c.b16 %v821, %v820
      %v836 = vpack.c.b16 %v823, %v822
      %v837 = vpack.c.b16 %v825, %v824
      %v838 = vpack.c.b16 %v827, %v826
      %v839 = vpack.c.b16 %v829, %v828
      %v840 = vpack.c.b16 %v831, %v830
      %v841 = vpack.c.b16 %v833, %v832
      %850 = vmatprep.subr.bf16.mxu0 0
      %851 = vmatpush1.bf16.msra.mxu0 %v834
      %852 = vmatprep.subr.bf16.mxu0 0
      %853 = vmatpush1.bf16.msra.mxu0 %v835
      %854 = vmatprep.subr.bf16.mxu0 0
      %855 = vmatpush1.bf16.msra.mxu0 %v836
      %856 = vmatprep.subr.bf16.mxu0 0
      %857 = vmatpush1.bf16.msra.mxu0 %v837
      %858 = vmatprep.subr.bf16.mxu0 0
      %859 = vmatpush1.bf16.msra.mxu0 %v838
      %860 = vmatprep.subr.bf16.mxu0 0
      %861 = vmatpush1.bf16.msra.mxu0 %v839
      %862 = vmatprep.subr.bf16.mxu0 0
      %863 = vmatpush1.bf16.msra.mxu0 %v840
      %864 = vmatprep.subr.bf16.mxu0 0
      %865 = vmatpush1.bf16.msra.mxu0 %v841
      %866 = vmatprep.subr.bf16.mxu0 0
      %867 = vmatpush1.bf16.msra.mxu0 0
      %868 = vmatprep.subr.bf16.mxu0 0
      %869 = vmatpush1.bf16.msra.mxu0 0
      %870 = vmatprep.subr.bf16.mxu0 0
      %871 = vmatpush1.bf16.msra.mxu0 0
      %872 = vmatprep.subr.bf16.mxu0 0
      %873 = vmatpush1.bf16.msra.mxu0 0
      %874 = vmatprep.subr.bf16.mxu0 0
      %875 = vmatpush1.bf16.msra.mxu0 0
      %876 = vmatprep.subr.bf16.mxu0 0
      %877 = vmatpush1.bf16.msra.mxu0 0
      %878 = vmatprep.subr.bf16.mxu0 0
      %879 = vmatpush1.bf16.msra.mxu0 0
      %880 = vmatprep.subr.bf16.mxu0 0
      %881 = vmatpush1.bf16.msra.mxu0 0
      %882 = vmatprep.mubr.bf16.mxu0 0
      %883 = vmatmul.mubr.bf16.gmra.mrb[0].mxu0 %v778
      %v884 = vpop.f32.mrb[0].mxu0
      %v885 = vadd.f32 %v800, %v884
      %v886 = vpop.f32.mrb[0].mxu0
      %v887 = vpop.f32.mrb[0].mxu0
      %v888 = vpop.f32.mrb[0].mxu0
      %889 = vdwg.mxu0
      %v890 = vtanh.pop %v885
      %891 = vst [vmem:[#allocation3] sm:$0x3] %v890
    $region33: #{mlp_forward.1} parent=1 // pred_fallthru
      _
    // Predicated region
    $region34: #{mlp_forward.1} parent=1 // pred_check
      _
    $region35: #{mlp_forward.1} parent=1 // pred_check_branch
      %893 = sbr.rel (0) target = $region37
    $region36: #{mlp_forward.1} parent=1 // pred_region
      %s895 = ssub.s32 32, 32
      %896 = vsyncadd [#allocation4], %s895
      %s898 = sshll.u32 [#allocation3], 4
      %s899 = int_to_ptr.vmem [resolvable:$true] %s898
      %901 = dma.vmem_to_hbm [thread:$0]  %s899, 32, %s5, [#allocation4]
    $region37: #{mlp_forward.1} parent=1 // pred_fallthru
      _
    // Predicated region
    $region38: #{mlp_forward.1} parent=1 // pred_check
      _
    $region39: #{mlp_forward.1} parent=1 // pred_check_branch
      %903 = sbr.rel (0) target = $region41
    $region40: #{mlp_forward.1} parent=1 // pred_region
      %904 = dma.done [#allocation4], 32
    $region41: #{mlp_forward.1} parent=1 // pred_fallthru
      _
    %905 = vsyncpa [#allocation4], 1

</llo_original>
